<compile_context>
chip_gen: v6e
topology: v6e:2x2x1
jax: 0.10.0
libtpu: 0.0.40
codegen_flags: <defaults>
</compile_context>

<pallas_src>
import functools

import jax
import jax.numpy as jnp
from jax import lax
from jax.experimental import pallas as pl
from jax.experimental.pallas import tpu as pltpu

_INV_SQRT2 = 0.7071067811865476
_BN_EPS = 1e-5


def _round_up(x, m):
    return ((x + m - 1) // m) * m


def _pick_tiles(M, tile_m):
    """Choose pass-1 / pass-2 lane tiles and the padded spatial extent Mp."""
    tm_cap = max(128, (tile_m // 128) * 128)
    m128 = _round_up(M, 128)
    if m128 <= tm_cap:
        # Small problem: aim for 2 tiles so both v7x TensorCores get work.
        tm = max(128, _round_up((M + 1) // 2, 128))
    else:
        tm = tm_cap
    Mp = _round_up(M, tm)
    n_tiles = Mp // tm
    # Pass 2 has no contraction dim -> can afford a bigger tile, but keep >= 2
    # tiles so the ("parallel",) grid still shards across v7x's 2 TensorCores.
    tm2 = tm
    if n_tiles >= 2:
        for mult in (8, 4, 2):
            cand = tm * mult
            if cand <= 8192 and Mp % cand == 0 and Mp // cand >= 2:
                tm2 = cand
                break
    return tm, tm2, Mp, n_tiles


def _conv_stats_kernel(w_ref, p_ref, y_ref, sum_ref, m2_ref, *,
                       tm, n_tiles, n_valid_last):
    """Pass 1: folded-K conv matmul for all 3 branches + per-tile BN partials.

    w_ref:   (3*Cout, Kp)  stacked flattened conv weights (taps folded into K)
    p_ref:   (Kp, tm)      shared im2col patch tile (spatial positions on lanes)
    y_ref:   (3*Cout, tm)  pre-BN conv outputs (staging dtype, lane-dense)
    sum_ref: (3*Cout, 1)   per-tile sum over valid spatial positions (f32)
    m2_ref:  (3*Cout, 1)   per-tile sum of squared deviations from tile mean
    """
    y = jnp.dot(w_ref[...], p_ref[...], preferred_element_type=jnp.float32)
    y_ref[...] = y.astype(y_ref.dtype)          # bf16 intermediate by default

    if n_valid_last == tm:
        # No padded columns anywhere: cheap unmasked path.
        s = jnp.sum(y, axis=1, keepdims=True)
        mean_j = s * (1.0 / tm)
        d = y - mean_j
    else:
        # Only the last tile has zero-padded columns; mask them out of the
        # statistics (their y is exactly 0, but the centered square is not).
        j = pl.program_id(0)
        n_valid = jnp.where(j == n_tiles - 1, n_valid_last, tm)
        col = lax.broadcasted_iota(jnp.int32, (1, tm), 1)
        mask = (col < n_valid).astype(jnp.float32)               # (1, tm)
        s = jnp.sum(y * mask, axis=1, keepdims=True)
        mean_j = s / n_valid.astype(jnp.float32)
        d = (y - mean_j) * mask
    sum_ref[...] = s
    m2_ref[...] = jnp.sum(d * d, axis=1, keepdims=True)


def _bn_combine_gelu_kernel(y_ref, a_ref, c_ref, *rest, cout, add_residual):
    """Pass 2: per-branch BN affine (y*a + c), branch sum, residual, exact GELU.

    y_ref: (3*Cout, tm) staging dtype; a_ref/c_ref: (3*Cout, 1) f32 BN scale/shift.
    rest = (x_ref?, out_ref); x_ref: (Cin, tm) f32 residual, out_ref: (Cout, tm) f32.
    """
    out_ref = rest[-1]
    s = None
    for b in range(3):
        lo, hi = b * cout, (b + 1) * cout
        zb = y_ref[lo:hi, :].astype(jnp.float32) * a_ref[lo:hi, :] + c_ref[lo:hi, :]
        s = zb if s is None else s + zb
    if add_residual:
        s = s + rest[0][...]
    # exact (erf-based) GELU, matching F.gelu default
    out_ref[...] = 0.5 * s * (1.0 + lax.erf(s * _INV_SQRT2))


def conv_block_shortcut(x_ncdhw, params, *, matmul_dtype=jnp.bfloat16, tile_m=4096):
    """Forward pass of ConvBlockShortCut.  x_ncdhw: (N, Cin, D, H, W)."""
    N, Cin, D, H, W = x_ncdhw.shape
    Cout = params["w1"].shape[0]
    add_residual = (Cin == Cout)
    M = N * D * H * W
    K5 = 5
    KK = (K5 ** 3) * Cin
    KKp = _round_up(KK, 128)          # folded contraction padded to 128 multiple
    C3 = 3 * Cout

    tm, tm2, Mp, n_tiles = _pick_tiles(M, tile_m)
    n_tiles2 = Mp // tm2
    n_valid_last = tm - (Mp - M)
    mm_size = jnp.dtype(matmul_dtype).itemsize

    x = jnp.transpose(x_ncdhw, (0, 2, 3, 4, 1)).astype(jnp.float32)       # NDHWC
    xpad = jnp.pad(x, ((0, 0), (2, 2), (2, 2), (2, 2), (0, 0)))           # pad 2
    # Cast to staging dtype BEFORE slicing taps -> slab is built once, in bf16.
    xpadT = jnp.transpose(xpad, (4, 0, 1, 2, 3)).astype(matmul_dtype)     # (Cin,N,Dp,Hp,Wp)

    # ---- shared im2col slab (KKp, Mp): one slab feeds all three branches ------
    pieces = []
    for kd in range(K5):
        for kh in range(K5):
            for kw in range(K5):
                pieces.append(
                    xpadT[:, :, kd:kd + D, kh:kh + H, kw:kw + W].reshape(Cin, M))
    if KKp > KK:
        pieces.append(jnp.zeros((KKp - KK, M), matmul_dtype))
    patches = jnp.concatenate(pieces, axis=0)                             # (KKp, M)
    if Mp > M:
        patches = jnp.pad(patches, ((0, 0), (0, Mp - M)))
    # TODO(synk): build this slab per tile inside the kernel from a halo-DMA'd
    # xpad block (memory_space=pl.ANY + VMEM scratch) for large D,H,W.

    # ---- weights: embed k=3 / k=1 into the 5^3 tap grid, flatten, stack -------
    def to_tap_grid(w_pt, k):
        w = jnp.transpose(w_pt.astype(jnp.float32), (2, 3, 4, 1, 0))      # (k,k,k,Cin,Cout)
        off = (K5 - k) // 2
        full = jnp.zeros((K5, K5, K5, Cin, Cout), jnp.float32)
        return full.at[off:off + k, off:off + k, off:off + k].set(w)

    def flatten_w(w_full):                                                # -> (Cout, KKp)
        wf = jnp.transpose(w_full.reshape(KK, Cout), (1, 0))
        return jnp.pad(wf, ((0, 0), (0, KKp - KK)))

    w_all = jnp.concatenate(
        [flatten_w(to_tap_grid(params["w5"], 5)),
         flatten_w(to_tap_grid(params["w3"], 3)),
         flatten_w(to_tap_grid(params["w1"], 1))], axis=0).astype(matmul_dtype)
    # NOTE: conv biases b5/b3/b1 are dropped: training-mode BatchNorm subtracts
    # the per-channel batch mean immediately after the conv, so they cancel.

    # explicit scoped-VMEM budget (v5e default is only 16 MiB); stays far under
    # v7x's 64 MiB physical VMEM.
    vmem_est = (2 * KKp * tm * mm_size + 2 * C3 * KKp * mm_size
                + 2 * C3 * tm * mm_size + 4 * C3 * 4 + (1 << 20))
    vmem_limit = int(min(48 * 2 ** 20, max(32 * 2 ** 20, 2 * vmem_est)))

    # ---- pass 1: conv matmuls + per-tile partial BN stats (parallel grid) -----
    ce1 = pl.CostEstimate(
        flops=int(2 * C3 * KKp * Mp), transcendentals=0,
        bytes_accessed=int(KKp * Mp * mm_size + n_tiles * C3 * KKp * mm_size
                           + C3 * Mp * mm_size + 2 * n_tiles * C3 * 4))
    kernel1 = functools.partial(_conv_stats_kernel, tm=tm, n_tiles=n_tiles,
                                n_valid_last=n_valid_last)
    y_flat, part_sum, part_m2 = pl.pallas_call(
        kernel1,
        out_shape=(jax.ShapeDtypeStruct((C3, Mp), matmul_dtype),
                   jax.ShapeDtypeStruct((n_tiles, C3, 1), jnp.float32),
                   jax.ShapeDtypeStruct((n_tiles, C3, 1), jnp.float32)),
        grid=(n_tiles,),
        in_specs=[pl.BlockSpec((C3, KKp), lambda j: (0, 0)),
                  pl.BlockSpec((KKp, tm), lambda j: (0, j))],
        out_specs=(pl.BlockSpec((C3, tm), lambda j: (0, j)),
                   pl.BlockSpec((None, C3, 1), lambda j: (j, 0, 0)),
                   pl.BlockSpec((None, C3, 1), lambda j: (j, 0, 0))),
        compiler_params=pltpu.CompilerParams(
            dimension_semantics=("parallel",), vmem_limit_bytes=vmem_limit),
        cost_estimate=ce1,
    )(w_all, patches)

    # ---- tiny cross-tile stat combine: exact group decomposition of variance --
    gamma = jnp.concatenate(
        [params["g1"], params["g2"], params["g3"]]).astype(jnp.float32)    # (3*Cout,)
    beta = jnp.concatenate(
        [params["be1"], params["be2"], params["be3"]]).astype(jnp.float32)
    sum_j = part_sum[:, :, 0]                                              # (n_tiles, C3)
    m2_j = part_m2[:, :, 0]
    counts = jnp.full((n_tiles, 1), float(tm), jnp.float32)
    if n_valid_last != tm:
        counts = counts.at[-1, 0].set(float(n_valid_last))
    mean = jnp.sum(sum_j, axis=0) / float(M)                               # (C3,)
    mean_j = sum_j / counts
    m2_tot = jnp.sum(m2_j, axis=0) + jnp.sum(
        counts * jnp.square(mean_j - mean[None, :]), axis=0)
    var = jnp.maximum(m2_tot / float(M), 0.0)          # biased, as BN training mode
    scale = gamma * lax.rsqrt(var + _BN_EPS)
    a = scale.reshape(C3, 1)
    c = (beta - mean * scale).reshape(C3, 1)

    # ---- pass 2: BN affine + branch sum + residual + exact GELU ---------------
    kernel2 = functools.partial(_bn_combine_gelu_kernel, cout=Cout,
                                add_residual=add_residual)
    in_specs = [pl.BlockSpec((C3, tm2), lambda j: (0, j)),
                pl.BlockSpec((C3, 1), lambda j: (0, 0)),
                pl.BlockSpec((C3, 1), lambda j: (0, 0))]
    args = [y_flat, a, c]
    res_bytes = 0
    if add_residual:
        xres = jnp.transpose(x, (4, 0, 1, 2, 3)).reshape(Cin, M)           # f32 residual
        if Mp > M:
            xres = jnp.pad(xres, ((0, 0), (0, Mp - M)))
        in_specs.append(pl.BlockSpec((Cin, tm2), lambda j: (0, j)))
        args.append(xres)
        res_bytes = Cin * Mp * 4

    ce2 = pl.CostEstimate(
        flops=int(Mp * (2 * C3 + 10 * Cout)), transcendentals=int(Cout * Mp),
        bytes_accessed=int(C3 * Mp * mm_size + res_bytes + Cout * Mp * 4
                           + 2 * n_tiles2 * C3 * 4))
    out_flat = pl.pallas_call(
        kernel2,
        out_shape=jax.ShapeDtypeStruct((Cout, Mp), jnp.float32),
        grid=(n_tiles2,),
        in_specs=in_specs,
        out_specs=pl.BlockSpec((Cout, tm2), lambda j: (0, j)),
        compiler_params=pltpu.CompilerParams(
            dimension_semantics=("parallel",), vmem_limit_bytes=vmem_limit),
        cost_estimate=ce2,
    )(*args)

    out = out_flat[:, :M].reshape(Cout, N, D, H, W)
    return jnp.transpose(out, (1, 0, 2, 3, 4))                             # NCDHW


def conv_block_shortcut_reference(x_ncdhw, params):
    """Pure-JAX reference (with conv biases) for correctness checking."""
    x = jnp.transpose(x_ncdhw, (0, 2, 3, 4, 1)).astype(jnp.float32)
    Cout = params["w1"].shape[0]

    def conv(w_pt, b, pad):
        w = jnp.transpose(w_pt, (2, 3, 4, 1, 0)).astype(jnp.float32)
        y = lax.conv_general_dilated(
            x, w, window_strides=(1, 1, 1), padding=[(pad, pad)] * 3,
            dimension_numbers=("NDHWC", "DHWIO", "NDHWC"))
        return y + b.reshape(1, 1, 1, 1, Cout)

    def bn(y, g, be):
        mean = jnp.mean(y, axis=(0, 1, 2, 3), keepdims=True)
        var = jnp.mean(jnp.square(y - mean), axis=(0, 1, 2, 3), keepdims=True)
        return ((y - mean) / jnp.sqrt(var + 1e-5)) * g.reshape(1, 1, 1, 1, Cout) \
               + be.reshape(1, 1, 1, 1, Cout)

    s = (bn(conv(params["w5"], params["b5"], 2), params["g1"], params["be1"])
         + bn(conv(params["w3"], params["b3"], 1), params["g2"], params["be2"])
         + bn(conv(params["w1"], params["b1"], 0), params["g3"], params["be3"]))
    if x_ncdhw.shape[1] == Cout:
        s = s + x
    out = jax.nn.gelu(s, approximate=False)
    return jnp.transpose(out, (0, 4, 1, 2, 3))


if __name__ == "__main__":
    key = jax.random.PRNGKey(0)
    ks = jax.random.split(key, 14)

    # small shapes consistent with the module: batch=2, channels=4, spatial=8^3
    N, C, D, H, W = 2, 4, 8, 8, 8
    in_channels = out_channels = C

    x = jax.random.normal(ks[0], (N, in_channels, D, H, W), jnp.float32)

    params = {
        # Conv3d weights in PyTorch layout (Cout, Cin, kD, kH, kW)
        "w5": 0.1 * jax.random.normal(ks[1], (out_channels, in_channels, 5, 5, 5), jnp.float32),
        "b5": 0.1 * jax.random.normal(ks[2], (out_channels,), jnp.float32),
        "w3": 0.1 * jax.random.normal(ks[3], (out_channels, in_channels, 3, 3, 3), jnp.float32),
        "b3": 0.1 * jax.random.normal(ks[4], (out_channels,), jnp.float32),
        "w1": 0.1 * jax.random.normal(ks[5], (out_channels, in_channels, 1, 1, 1), jnp.float32),
        "b1": 0.1 * jax.random.normal(ks[6], (out_channels,), jnp.float32),
        # BatchNorm3d affine params (gamma, beta) per branch
        "g1": 1.0 + 0.1 * jax.random.normal(ks[7], (out_channels,), jnp.float32),
        "be1": 0.1 * jax.random.normal(ks[8], (out_channels,), jnp.float32),
        "g2": 1.0 + 0.1 * jax.random.normal(ks[9], (out_channels,), jnp.float32),
        "be2": 0.1 * jax.random.normal(ks[10], (out_channels,), jnp.float32),
        "g3": 1.0 + 0.1 * jax.random.normal(ks[11], (out_channels,), jnp.float32),
        "be3": 0.1 * jax.random.normal(ks[12], (out_channels,), jnp.float32),
    }

    ref = conv_block_shortcut_reference(x, params)

    # default path: bf16 MXU staging + bf16 intermediate (recommended on
    # v5e/v6e/v7x for this memory-bound op); abs tolerance on O(1)-O(3) outputs
    out_bf16 = jax.block_until_ready(conv_block_shortcut(x, params))
    assert out_bf16.shape == (N, out_channels, D, H, W), out_bf16.shape
    err_bf16 = float(jnp.max(jnp.abs(out_bf16 - ref)))
    assert err_bf16 < 1e-1, f"bf16 mismatch vs reference, max abs err = {err_bf16}"

    # f32 staging + f32 intermediate: kept only as a tight numerics cross-check
    out_f32 = jax.block_until_ready(
        conv_block_shortcut(x, params, matmul_dtype=jnp.float32))
    err_f32 = float(jnp.max(jnp.abs(out_f32 - ref)))
    assert err_f32 < 3e-3, f"f32 mismatch vs reference, max abs err = {err_f32}"

    # odd spatial size: exercises the M-padding + masked per-tile-stats path
    x2 = jax.random.normal(ks[13], (1, in_channels, 5, 5, 5), jnp.float32)
    ref2 = conv_block_shortcut_reference(x2, params)
    out2 = jax.block_until_ready(conv_block_shortcut(x2, params))
    err2 = float(jnp.max(jnp.abs(out2 - ref2)))
    assert err2 < 1e-1, f"padded-M mismatch vs reference, max abs err = {err2}"

    print("KERNEL_OK")
</pallas_src>

<mosaic_0001>
module attributes {stable_mosaic.version = 11 : i64} {
  func.func @_conv_stats_kernel(%arg0: i32, %arg1: memref<12x512xbf16, #tpu.memory_space<vmem>>, %arg2: memref<512x512xbf16, #tpu.memory_space<vmem>>, %arg3: memref<12x512xbf16, #tpu.memory_space<vmem>>, %arg4: memref<1x12x1xf32, #tpu.memory_space<vmem>>, %arg5: memref<1x12x1xf32, #tpu.memory_space<vmem>>) attributes {dimension_semantics = [#tpu.dimension_semantics<parallel>], iteration_bounds = array<i64: 2>, scalar_prefetch = 0 : i64, scratch_operands = 0 : i64, tpu.core_type = #tpu.core_type<tc>, window_params = [{pipeline_mode = #tpu.pipeline_mode<synchronous>, transform_indices = @transform_0, window_bounds = array<i64: 12, 512>}, {transform_indices = @transform_1, window_bounds = array<i64: 512, 512>}, {transform_indices = @transform_2, window_bounds = array<i64: 12, 512>}, {transform_indices = @transform_3, window_bounds = array<i64: 1, 12, 1>}, {transform_indices = @transform_4, window_bounds = array<i64: 1, 12, 1>}]} {
    %c0 = arith.constant 0 : index
    %c0_0 = arith.constant 0 : index
    %0 = vector.load %arg1[%c0, %c0_0] : memref<12x512xbf16, #tpu.memory_space<vmem>>, vector<12x512xbf16>
    %c0_1 = arith.constant 0 : index
    %c0_2 = arith.constant 0 : index
    %1 = vector.load %arg2[%c0_1, %c0_2] : memref<512x512xbf16, #tpu.memory_space<vmem>>, vector<512x512xbf16>
    %cst = arith.constant dense<0.000000e+00> : vector<12x512xf32>
    %2 = tpu.matmul %0, %1, %cst {dimension_numbers = #tpu.dot_dimension_numbers<[1], [0], [0], [1], [0, 0, 1, 1], [], []>} : vector<12x512xbf16>, vector<512x512xbf16>, vector<12x512xf32> -> vector<12x512xf32>
    %3 = arith.truncf %2 : vector<12x512xf32> to vector<12x512xbf16>
    %c0_3 = arith.constant 0 : index
    %c0_4 = arith.constant 0 : index
    %4 = vector.load %arg3[%c0_3, %c0_4] : memref<12x512xbf16, #tpu.memory_space<vmem>>, vector<12x512xbf16>
    tpu.vector_store %arg3[%c0_3, %c0_4], %3 {strides = array<i32>} : memref<12x512xbf16, #tpu.memory_space<vmem>>, vector<12x512xbf16>,
    %cst_5 = arith.constant dense<0.000000e+00> : vector<12xf32>
    %5 = vector.multi_reduction <add>, %2, %cst_5 [1] : vector<12x512xf32> to vector<12xf32>
    %6 = vector.shape_cast %5 : vector<12xf32> to vector<12x1xf32>
    %cst_6 = arith.constant 0.001953125 : f32
    %7 = vector.broadcast %cst_6 : f32 to vector<12x1xf32>
    %8 = arith.mulf %6, %7 : vector<12x1xf32>
    %9 = vector.broadcast %8 : vector<12x1xf32> to vector<12x512xf32>
    %10 = arith.subf %2, %9 : vector<12x512xf32>
    %c0_7 = arith.constant 0 : index
    %c0_8 = arith.constant 0 : index
    %c0_9 = arith.constant 0 : index
    %11 = vector.load %arg4[%c0_7, %c0_8, %c0_9] : memref<1x12x1xf32, #tpu.memory_space<vmem>>, vector<1x12x1xf32>
    %12 = vector.shape_cast %11 : vector<1x12x1xf32> to vector<12x1xf32>
    %13 = vector.shape_cast %6 : vector<12x1xf32> to vector<1x12x1xf32>
    tpu.vector_store %arg4[%c0_7, %c0_8, %c0_9], %13 {strides = array<i32>} : memref<1x12x1xf32, #tpu.memory_space<vmem>>, vector<1x12x1xf32>,
    %14 = arith.mulf %10, %10 : vector<12x512xf32>
    %cst_10 = arith.constant dense<0.000000e+00> : vector<12xf32>
    %15 = vector.multi_reduction <add>, %14, %cst_10 [1] : vector<12x512xf32> to vector<12xf32>
    %16 = vector.shape_cast %15 : vector<12xf32> to vector<12x1xf32>
    %c0_11 = arith.constant 0 : index
    %c0_12 = arith.constant 0 : index
    %c0_13 = arith.constant 0 : index
    %17 = vector.load %arg5[%c0_11, %c0_12, %c0_13] : memref<1x12x1xf32, #tpu.memory_space<vmem>>, vector<1x12x1xf32>
    %18 = vector.shape_cast %17 : vector<1x12x1xf32> to vector<12x1xf32>
    %19 = vector.shape_cast %16 : vector<12x1xf32> to vector<1x12x1xf32>
    tpu.vector_store %arg5[%c0_11, %c0_12, %c0_13], %19 {strides = array<i32>} : memref<1x12x1xf32, #tpu.memory_space<vmem>>, vector<1x12x1xf32>,
    return
  }
  func.func @transform_0(%arg0: i32) -> (i32, i32) {
    %c0_i32 = arith.constant 0 : i32
    %c0_i32_0 = arith.constant 0 : i32
    %c0_i32_1 = arith.constant 0 : i32
    return %c0_i32, %c0_i32_0 : i32, i32
  }
  func.func @transform_1(%arg0: i32) -> (i32, i32) {
    %c0_i32 = arith.constant 0 : i32
    %c0_i32_0 = arith.constant 0 : i32
    return %c0_i32, %arg0 : i32, i32
  }
  func.func @transform_2(%arg0: i32) -> (i32, i32) {
    %c0_i32 = arith.constant 0 : i32
    %c0_i32_0 = arith.constant 0 : i32
    return %c0_i32, %arg0 : i32, i32
  }
  func.func @transform_3(%arg0: i32) -> (i32, i32, i32) {
    %c0_i32 = arith.constant 0 : i32
    %c0_i32_0 = arith.constant 0 : i32
    %c0_i32_1 = arith.constant 0 : i32
    return %arg0, %c0_i32, %c0_i32_0 : i32, i32, i32
  }
  func.func @transform_4(%arg0: i32) -> (i32, i32, i32) {
    %c0_i32 = arith.constant 0 : i32
    %c0_i32_0 = arith.constant 0 : i32
    %c0_i32_1 = arith.constant 0 : i32
    return %arg0, %c0_i32, %c0_i32_0 : i32, i32, i32
  }
}

</mosaic_0001>

<llo_original>
// kernel: tpu_custom_call.1
$region0: #{tpu_custom_call.1}
  #allocation0 [shape = 'u32[]', space=smem, size = 0x4, offset = 0x4, fixed_abs, tag = 'smem constant byte address 0x4 - core index']
  #allocation1 [shape = 'u32[144,128]{1,0:T(1,128)}', space=vmem, size = 0x12000, scoped, tag = 'internal scratch']
  %s0 = inlined_call_operand.hbm [shape: bf16[12,512], index: 0, kind: input, shape index: {}]
  %s1 = inlined_call_operand.hbm [shape: bf16[512,1024], index: 1, kind: input, shape index: {}]
  %s2 = inlined_call_operand.hbm [shape: bf16[12,1024], index: 2, kind: output, shape index: {0}]
  %s3 = inlined_call_operand.vmem [shape: f32[2,12,1], index: 3, kind: output, shape index: {1}]
  %s4 = inlined_call_operand.vmem [shape: f32[2,12,1], index: 4, kind: output, shape index: {2}]
  %5 = xla_tuple %s2, %s3, %s4
  %s6 = sld [smem:[#allocation0]]
  $region65: #{tpu_custom_call.1} parent=0
    _
  %s8 = ssub.s32 1, %s6
  %s9 = scalar_select 0, %s8, %s6
  $region1: #{tpu_custom_call.1} parent=0
    #allocation2 [shape = 'u8[16384]{0}', space=vmem, size = 0x4000, scoped, tag = 'input window, operand 0, single buffered']
    #allocation3 [shape = 's32[2]{0}', space=sflag, size = 0x8, scoped, tag = 'scoped memory for tpu_custom_call.1']
    #allocation4 [shape = 's32[2]{0}', space=sflag, size = 0x8, scoped, tag = 'scoped memory for tpu_custom_call.1']
    #allocation5 [shape = 'u8[1048576]{0}', space=vmem, size = 0x100000, scoped, tag = 'input window, operand 1']
    #allocation6 [shape = 's32[2]{0}', space=sflag, size = 0x8, scoped, tag = 'scoped memory for tpu_custom_call.1']
    #allocation7 [shape = 'u8[32768]{0}', space=vmem, size = 0x8000, scoped, tag = 'output window, operand 0']
    %10 = vsyncpa [#allocation3], 0
    %11 = vsyncpa [#allocation6], 0
    %s12 = scalar_lea.sflag [#allocation6], 1
    %13 = vsyncpa %s12, 0
    %14 = vsyncpa [#allocation4], 0
    %s15 = scalar_lea.sflag [#allocation4], 1
    %16 = vsyncpa %s15, 0
    loop: start=0, step=1, limit=4
    $region2: #{tpu_custom_call.1} parent=1 // loop_pre_header
      _
    $region3: #{tpu_custom_call.1} parent=1 // loop_header
      %s18 = sphi 0, %s22
      %p19 = scmp.ge.s32.totalorder %s18, 4
      %s26 = sphi 0, %s26
      %s28 = sphi 0, %s26
      %s29 = sphi 0, %s28
      %s43 = sphi 0, %s29
      %s49 = sphi 0, %s51
      %s52 = sphi 0, %s49
      %s53 = sphi 0, %s52
      %s69 = sphi 0, %s53
      %s75 = sphi 0, %s77
      %s78 = sphi 0, %s75
      %s79 = sphi 0, %s78
      %s95 = sphi 0, %s79
      %s101 = sphi 0, %s103
      %s104 = sphi 0, %s101
      %s105 = sphi 0, %s104
      %s121 = sphi 0, %s105
      %s127 = sphi 0, %s129
      %s130 = sphi 0, %s127
      %s131 = sphi 0, %s130
      %s147 = sphi 0, %s131
    $region4: #{tpu_custom_call.1} parent=1 // loop_header_branch
      %21 = sbr.rel (%p19) target = $region8
    $region5: #{tpu_custom_call.1} parent=1 // loop_body
      %s23 = ssub.s32 %s18, 1
      %s24 = ssub.s32 %s18, 2
      %s25 = sadd.s32 %s18, 1
      %s27 = sadd.s32 %s26, 1
      %p30 = scmp.eq.s32.totalorder %s18, 1
      %p31 = scmp.ne.s32.totalorder %s26, %s28
      %p32 = scmp.eq.s32.totalorder %s18, 0
      %p33 = por %p31, %p32
      %p34 = scmp.ne.s32.totalorder %s26, %s28
      %p35 = scmp.eq.s32.totalorder %s23, 1
      %p36 = por %p34, %p35
      %p37 = scmp.ne.s32.totalorder %s28, %s29
      %p38 = scmp.eq.s32.totalorder %s23, 0
      %p39 = por %p37, %p38
      %p40 = scmp.ne.s32.totalorder %s28, %s29
      %p41 = scmp.eq.s32.totalorder %s24, 1
      %p42 = por %p40, %p41
      %p44 = scmp.ne.s32.totalorder %s29, %s43
      %p45 = scmp.eq.s32.totalorder %s24, 0
      %p46 = por %p44, %p45
      %s47 = ssub.s32 %s18, %s25
      %p48 = scmp.eq.s32.totalorder %s47, 0
      %s50 = sadd.s32 %s49, 1
      %s51 = scalar_select %p48, %s49, %s50
      %p54 = pneg %p48
      %p55 = scmp.eq.s32.totalorder %s18, 1
      %p56 = por %p54, %p55
      %p57 = scmp.ne.s32.totalorder %s49, %s52
      %p58 = scmp.eq.s32.totalorder %s18, 0
      %p59 = por %p57, %p58
      %p60 = scmp.ne.s32.totalorder %s49, %s52
      %p61 = scmp.eq.s32.totalorder %s23, 1
      %p62 = por %p60, %p61
      %p63 = scmp.ne.s32.totalorder %s52, %s53
      %p64 = scmp.eq.s32.totalorder %s23, 0
      %p65 = por %p63, %p64
      %p66 = scmp.ne.s32.totalorder %s52, %s53
      %p67 = scmp.eq.s32.totalorder %s24, 1
      %p68 = por %p66, %p67
      %p70 = scmp.ne.s32.totalorder %s53, %s69
      %p71 = scmp.eq.s32.totalorder %s24, 0
      %p72 = por %p70, %p71
      %s73 = ssub.s32 %s18, %s25
      %p74 = scmp.eq.s32.totalorder %s73, 0
      %s76 = sadd.s32 %s75, 1
      %s77 = scalar_select %p74, %s75, %s76
      %p80 = pneg %p74
      %p81 = scmp.eq.s32.totalorder %s18, 1
      %p82 = por %p80, %p81
      %p83 = scmp.ne.s32.totalorder %s75, %s78
      %p84 = scmp.eq.s32.totalorder %s18, 0
      %p85 = por %p83, %p84
      %p86 = scmp.ne.s32.totalorder %s75, %s78
      %p87 = scmp.eq.s32.totalorder %s23, 1
      %p88 = por %p86, %p87
      %p89 = scmp.ne.s32.totalorder %s78, %s79
      %p90 = scmp.eq.s32.totalorder %s23, 0
      %p91 = por %p89, %p90
      %p92 = scmp.ne.s32.totalorder %s78, %s79
      %p93 = scmp.eq.s32.totalorder %s24, 1
      %p94 = por %p92, %p93
      %p96 = scmp.ne.s32.totalorder %s79, %s95
      %p97 = scmp.eq.s32.totalorder %s24, 0
      %p98 = por %p96, %p97
      %s99 = ssub.s32 %s18, %s25
      %p100 = scmp.eq.s32.totalorder %s99, 0
      %s102 = sadd.s32 %s101, 1
      %s103 = scalar_select %p100, %s101, %s102
      %p106 = pneg %p100
      %p107 = scmp.eq.s32.totalorder %s18, 1
      %p108 = por %p106, %p107
      %p109 = scmp.ne.s32.totalorder %s101, %s104
      %p110 = scmp.eq.s32.totalorder %s18, 0
      %p111 = por %p109, %p110
      %p112 = scmp.ne.s32.totalorder %s101, %s104
      %p113 = scmp.eq.s32.totalorder %s23, 1
      %p114 = por %p112, %p113
      %p115 = scmp.ne.s32.totalorder %s104, %s105
      %p116 = scmp.eq.s32.totalorder %s23, 0
      %p117 = por %p115, %p116
      %p118 = scmp.ne.s32.totalorder %s104, %s105
      %p119 = scmp.eq.s32.totalorder %s24, 1
      %p120 = por %p118, %p119
      %p122 = scmp.ne.s32.totalorder %s105, %s121
      %p123 = scmp.eq.s32.totalorder %s24, 0
      %p124 = por %p122, %p123
      %s125 = ssub.s32 %s18, %s25
      %p126 = scmp.eq.s32.totalorder %s125, 0
      %s128 = sadd.s32 %s127, 1
      %s129 = scalar_select %p126, %s127, %s128
      %p132 = pneg %p126
      %p133 = scmp.eq.s32.totalorder %s18, 1
      %p134 = por %p132, %p133
      %p135 = scmp.ne.s32.totalorder %s127, %s130
      %p136 = scmp.eq.s32.totalorder %s18, 0
      %p137 = por %p135, %p136
      %p138 = scmp.ne.s32.totalorder %s127, %s130
      %p139 = scmp.eq.s32.totalorder %s23, 1
      %p140 = por %p138, %p139
      %p141 = scmp.ne.s32.totalorder %s130, %s131
      %p142 = scmp.eq.s32.totalorder %s23, 0
      %p143 = por %p141, %p142
      %p144 = scmp.ne.s32.totalorder %s130, %s131
      %p145 = scmp.eq.s32.totalorder %s24, 1
      %p146 = por %p144, %p145
      %p148 = scmp.ne.s32.totalorder %s131, %s147
      %p149 = scmp.eq.s32.totalorder %s24, 0
      %p150 = por %p148, %p149
      %p151 = scmp.le.s32.totalorder 1, %s18
      %p152 = scmp.lt.s32.totalorder %s18, 3
      %p153 = pnand %p151, %p152
      %p154 = pneg %p153
      // Predicated region
      $region9: #{tpu_custom_call.1} parent=5 // pred_check
        _
      $region10: #{tpu_custom_call.1} parent=5 // pred_check_branch
        %156 = sbr.rel (%p153) target = $region12
      $region11: #{tpu_custom_call.1} parent=5 // pred_region
        %s157 = ssub.s32 %s18, 1
        // Predicated region
        $region13: #{tpu_custom_call.1} parent=11 // pred_check
          %p158 = pneg %p39
        $region14: #{tpu_custom_call.1} parent=11 // pred_check_branch
          %160 = sbr.rel (%p158) target = $region16
        $region15: #{tpu_custom_call.1} parent=11 // pred_region
          %s162 = ssub.s32 512, 512
          %163 = vsyncadd [#allocation3], %s162
          %s164 = sshll.u32 [#allocation2], 4
          %s165 = int_to_ptr.vmem [resolvable:$true] %s164
          %170 = dma.hbm_to_vmem [thread:$0]  %s0, 512, %s165, [#allocation3], 256, 256, 16
        $region16: #{tpu_custom_call.1} parent=11 // pred_fallthru
          _
      $region12: #{tpu_custom_call.1} parent=5 // pred_fallthru
        _
      %p171 = scmp.lt.s32.totalorder %s18, 2
      // Predicated region
      $region17: #{tpu_custom_call.1} parent=5 // pred_check
        %p172 = pneg %p171
      $region18: #{tpu_custom_call.1} parent=5 // pred_check_branch
        %174 = sbr.rel (%p172) target = $region20
      $region19: #{tpu_custom_call.1} parent=5 // pred_region
        // Predicated region
        $region21: #{tpu_custom_call.1} parent=19 // pred_check
          %p175 = pneg %p59
        $region22: #{tpu_custom_call.1} parent=19 // pred_check_branch
          %177 = sbr.rel (%p175) target = $region24
        $region23: #{tpu_custom_call.1} parent=19 // pred_region
          %s178 = sand.u32 %s49, 1
          %s179 = scalar_lea.sflag [#allocation6], %s178
          %s180 = sand.u32 %s49, 1
          %s181 = smul.addr %s180, 1024
          %s182 = scalar_lea.vmem [#allocation5], %s181
          %s183 = smul.u32 4, %s18
          %s185 = ssub.s32 16384, 16384
          %186 = vsyncadd %s179, %s185
          %s187 = smul.addr %s183, 64
          %s188 = scalar_lea.hbm %s1, %s187
          %s189 = sshll.u32 %s182, 4
          %s190 = int_to_ptr.vmem [resolvable:$true] %s189
          %195 = dma.hbm_to_vmem [thread:$0]  %s188, 16384, %s190, %s179, 512, 256, 16
        $region24: #{tpu_custom_call.1} parent=19 // pred_fallthru
          _
      $region20: #{tpu_custom_call.1} parent=5 // pred_fallthru
        _
      %p196 = scmp.le.s32.totalorder 1, %s18
      %p197 = scmp.lt.s32.totalorder %s18, 3
      %p198 = pnand %p196, %p197
      %p199 = pneg %p198
      // Predicated region
      $region25: #{tpu_custom_call.1} parent=5 // pred_check
        _
      $region26: #{tpu_custom_call.1} parent=5 // pred_check_branch
        %201 = sbr.rel (%p198) target = $region28
      $region27: #{tpu_custom_call.1} parent=5 // pred_region
        %s202 = ssub.s32 %s18, 1
        // Predicated region
        $region29: #{tpu_custom_call.1} parent=27 // pred_check
          %p203 = pneg %p39
        $region30: #{tpu_custom_call.1} parent=27 // pred_check_branch
          %205 = sbr.rel (%p203) target = $region32
        $region31: #{tpu_custom_call.1} parent=27 // pred_region
          %206 = dma.done [#allocation3], 512
        $region32: #{tpu_custom_call.1} parent=27 // pred_fallthru
          _
        %s207 = sand.u32 %s52, 1
        %s208 = scalar_lea.sflag [#allocation6], %s207
        %s209 = sand.u32 %s52, 1
        %s210 = smul.addr %s209, 1024
        %s211 = scalar_lea.vmem [#allocation5], %s210
        // Predicated region
        $region33: #{tpu_custom_call.1} parent=27 // pred_check
          %p212 = pneg %p65
        $region34: #{tpu_custom_call.1} parent=27 // pred_check_branch
          %214 = sbr.rel (%p212) target = $region36
        $region35: #{tpu_custom_call.1} parent=27 // pred_region
          %215 = dma.done %s208, 16384
        $region36: #{tpu_custom_call.1} parent=27 // pred_fallthru
          _
        %p216 = pneg %p39
        %p217 = pneg %p36
        %s218 = sand.u32 %s52, 1
        %s219 = scalar_lea.sflag [#allocation6], %s218
        %s220 = sand.u32 %s52, 1
        %s221 = smul.addr %s220, 1024
        %s222 = scalar_lea.vmem [#allocation5], %s221
        %p223 = pneg %p65
        %p224 = pneg %p62
        %p225 = pneg %p91
        %p226 = pneg %p88
        %s227 = sand.u32 %s78, 1
        %s228 = scalar_lea.sflag [#allocation4], %s227
        %s229 = sand.u32 %s78, 1
        %s230 = smul.addr %s229, 32
        %s231 = scalar_lea.vmem [#allocation7], %s230
        %p232 = pneg %p117
        %p233 = pneg %p114
        %p234 = scmp.lt.s32.totalorder %s23, 1
        %s235 = scalar_select %p234, %s23, 1
        %s236 = smul.addr %s235, 2
        %s237 = smul.addr %s236, 8
        %s238 = scalar_lea.vmem %s3, %s237
        %p239 = pneg %p143
        %p240 = pneg %p140
        %p241 = scmp.lt.s32.totalorder %s23, 1
        %s242 = scalar_select %p241, %s23, 1
        %s243 = smul.addr %s242, 2
        %s244 = smul.addr %s243, 8
        %s245 = scalar_lea.vmem %s4, %s244
        %s246 = smul.u32 4, %s23
        %s247 = smul.u32 4, %s23
        %p248 = scmp.lt.s32.totalorder %s23, 1
        %s249 = scalar_select %p248, %s23, 1
        %s250 = smul.addr %s249, 2
        %s251 = smul.addr %s250, 8
        %s252 = scalar_lea.vmem %s3, %s251
        %p253 = scmp.lt.s32.totalorder %s23, 1
        %s254 = scalar_select %p253, %s23, 1
        %s255 = smul.addr %s254, 2
        %s256 = smul.addr %s255, 8
        %s257 = scalar_lea.vmem %s4, %s256
        %v258 = vld [vmem:[#allocation2] sm:$0xff]
        %v259 = vld [vmem:[#allocation2 + $0x8] sm:$0xff]
        %v260 = vld [vmem:[#allocation2 + $0x10] sm:$0x33]
        %v261 = vld [vmem:[#allocation2 + $0x18] sm:$0x33]
        %v262 = vld [vmem:[%s211] sm:$0xff]
        %v263 = vld [vmem:[%s211 + $0x8] sm:$0xff]
        %v264 = vld [vmem:[%s211 + $0x10] sm:$0xff]
        %v265 = vld [vmem:[%s211 + $0x18] sm:$0xff]
        %v266 = vld [vmem:[%s211 + $0x20] sm:$0xff]
        %v267 = vld [vmem:[%s211 + $0x28] sm:$0xff]
        %v268 = vld [vmem:[%s211 + $0x30] sm:$0xff]
        %v269 = vld [vmem:[%s211 + $0x38] sm:$0xff]
        %v270 = vld [vmem:[%s211 + $0x40] sm:$0xff]
        %v271 = vld [vmem:[%s211 + $0x48] sm:$0xff]
        %v272 = vld [vmem:[%s211 + $0x50] sm:$0xff]
        %v273 = vld [vmem:[%s211 + $0x58] sm:$0xff]
        %v274 = vld [vmem:[%s211 + $0x60] sm:$0xff]
        %v275 = vld [vmem:[%s211 + $0x68] sm:$0xff]
        %v276 = vld [vmem:[%s211 + $0x70] sm:$0xff]
        %v277 = vld [vmem:[%s211 + $0x78] sm:$0xff]
        %v278 = vld [vmem:[%s211 + $0x80] sm:$0xff]
        %v279 = vld [vmem:[%s211 + $0x88] sm:$0xff]
        %v280 = vld [vmem:[%s211 + $0x90] sm:$0xff]
        %v281 = vld [vmem:[%s211 + $0x98] sm:$0xff]
        %v282 = vld [vmem:[%s211 + $0xa0] sm:$0xff]
        %v283 = vld [vmem:[%s211 + $0xa8] sm:$0xff]
        %v284 = vld [vmem:[%s211 + $0xb0] sm:$0xff]
        %v285 = vld [vmem:[%s211 + $0xb8] sm:$0xff]
        %v286 = vld [vmem:[%s211 + $0xc0] sm:$0xff]
        %v287 = vld [vmem:[%s211 + $0xc8] sm:$0xff]
        %v288 = vld [vmem:[%s211 + $0xd0] sm:$0xff]
        %v289 = vld [vmem:[%s211 + $0xd8] sm:$0xff]
        %v290 = vld [vmem:[%s211 + $0xe0] sm:$0xff]
        %v291 = vld [vmem:[%s211 + $0xe8] sm:$0xff]
        %v292 = vld [vmem:[%s211 + $0xf0] sm:$0xff]
        %v293 = vld [vmem:[%s211 + $0xf8] sm:$0xff]
        %v294 = vld [vmem:[%s211 + $0x100] sm:$0xff]
        %v295 = vld [vmem:[%s211 + $0x108] sm:$0xff]
        %v296 = vld [vmem:[%s211 + $0x110] sm:$0xff]
        %v297 = vld [vmem:[%s211 + $0x118] sm:$0xff]
        %v298 = vld [vmem:[%s211 + $0x120] sm:$0xff]
        %v299 = vld [vmem:[%s211 + $0x128] sm:$0xff]
        %v300 = vld [vmem:[%s211 + $0x130] sm:$0xff]
        %v301 = vld [vmem:[%s211 + $0x138] sm:$0xff]
        %v302 = vld [vmem:[%s211 + $0x140] sm:$0xff]
        %v303 = vld [vmem:[%s211 + $0x148] sm:$0xff]
        %v304 = vld [vmem:[%s211 + $0x150] sm:$0xff]
        %v305 = vld [vmem:[%s211 + $0x158] sm:$0xff]
        %v306 = vld [vmem:[%s211 + $0x160] sm:$0xff]
        %v307 = vld [vmem:[%s211 + $0x168] sm:$0xff]
        %v308 = vld [vmem:[%s211 + $0x170] sm:$0xff]
        %v309 = vld [vmem:[%s211 + $0x178] sm:$0xff]
        %v310 = vld [vmem:[%s211 + $0x180] sm:$0xff]
        %v311 = vld [vmem:[%s211 + $0x188] sm:$0xff]
        %v312 = vld [vmem:[%s211 + $0x190] sm:$0xff]
        %v313 = vld [vmem:[%s211 + $0x198] sm:$0xff]
        %v314 = vld [vmem:[%s211 + $0x1a0] sm:$0xff]
        %v315 = vld [vmem:[%s211 + $0x1a8] sm:$0xff]
        %v316 = vld [vmem:[%s211 + $0x1b0] sm:$0xff]
        %v317 = vld [vmem:[%s211 + $0x1b8] sm:$0xff]
        %v318 = vld [vmem:[%s211 + $0x1c0] sm:$0xff]
        %v319 = vld [vmem:[%s211 + $0x1c8] sm:$0xff]
        %v320 = vld [vmem:[%s211 + $0x1d0] sm:$0xff]
        %v321 = vld [vmem:[%s211 + $0x1d8] sm:$0xff]
        %v322 = vld [vmem:[%s211 + $0x1e0] sm:$0xff]
        %v323 = vld [vmem:[%s211 + $0x1e8] sm:$0xff]
        %v324 = vld [vmem:[%s211 + $0x1f0] sm:$0xff]
        %v325 = vld [vmem:[%s211 + $0x1f8] sm:$0xff]
        %v326 = vld [vmem:[%s211 + $0x200] sm:$0xff]
        %v327 = vld [vmem:[%s211 + $0x208] sm:$0xff]
        %v328 = vld [vmem:[%s211 + $0x210] sm:$0xff]
        %v329 = vld [vmem:[%s211 + $0x218] sm:$0xff]
        %v330 = vld [vmem:[%s211 + $0x220] sm:$0xff]
        %v331 = vld [vmem:[%s211 + $0x228] sm:$0xff]
        %v332 = vld [vmem:[%s211 + $0x230] sm:$0xff]
        %v333 = vld [vmem:[%s211 + $0x238] sm:$0xff]
        %v334 = vld [vmem:[%s211 + $0x240] sm:$0xff]
        %v335 = vld [vmem:[%s211 + $0x248] sm:$0xff]
        %v336 = vld [vmem:[%s211 + $0x250] sm:$0xff]
        %v337 = vld [vmem:[%s211 + $0x258] sm:$0xff]
        %v338 = vld [vmem:[%s211 + $0x260] sm:$0xff]
        %v339 = vld [vmem:[%s211 + $0x268] sm:$0xff]
        %v340 = vld [vmem:[%s211 + $0x270] sm:$0xff]
        %v341 = vld [vmem:[%s211 + $0x278] sm:$0xff]
        %v342 = vld [vmem:[%s211 + $0x280] sm:$0xff]
        %v343 = vld [vmem:[%s211 + $0x288] sm:$0xff]
        %v344 = vld [vmem:[%s211 + $0x290] sm:$0xff]
        %v345 = vld [vmem:[%s211 + $0x298] sm:$0xff]
        %v346 = vld [vmem:[%s211 + $0x2a0] sm:$0xff]
        %v347 = vld [vmem:[%s211 + $0x2a8] sm:$0xff]
        %v348 = vld [vmem:[%s211 + $0x2b0] sm:$0xff]
        %v349 = vld [vmem:[%s211 + $0x2b8] sm:$0xff]
        %v350 = vld [vmem:[%s211 + $0x2c0] sm:$0xff]
        %v351 = vld [vmem:[%s211 + $0x2c8] sm:$0xff]
        %v352 = vld [vmem:[%s211 + $0x2d0] sm:$0xff]
        %v353 = vld [vmem:[%s211 + $0x2d8] sm:$0xff]
        %v354 = vld [vmem:[%s211 + $0x2e0] sm:$0xff]
        %v355 = vld [vmem:[%s211 + $0x2e8] sm:$0xff]
        %v356 = vld [vmem:[%s211 + $0x2f0] sm:$0xff]
        %v357 = vld [vmem:[%s211 + $0x2f8] sm:$0xff]
        %v358 = vld [vmem:[%s211 + $0x300] sm:$0xff]
        %v359 = vld [vmem:[%s211 + $0x308] sm:$0xff]
        %v360 = vld [vmem:[%s211 + $0x310] sm:$0xff]
        %v361 = vld [vmem:[%s211 + $0x318] sm:$0xff]
        %v362 = vld [vmem:[%s211 + $0x320] sm:$0xff]
        %v363 = vld [vmem:[%s211 + $0x328] sm:$0xff]
        %v364 = vld [vmem:[%s211 + $0x330] sm:$0xff]
        %v365 = vld [vmem:[%s211 + $0x338] sm:$0xff]
        %v366 = vld [vmem:[%s211 + $0x340] sm:$0xff]
        %v367 = vld [vmem:[%s211 + $0x348] sm:$0xff]
        %v368 = vld [vmem:[%s211 + $0x350] sm:$0xff]
        %v369 = vld [vmem:[%s211 + $0x358] sm:$0xff]
        %v370 = vld [vmem:[%s211 + $0x360] sm:$0xff]
        %v371 = vld [vmem:[%s211 + $0x368] sm:$0xff]
        %v372 = vld [vmem:[%s211 + $0x370] sm:$0xff]
        %v373 = vld [vmem:[%s211 + $0x378] sm:$0xff]
        %v374 = vld [vmem:[%s211 + $0x380] sm:$0xff]
        %v375 = vld [vmem:[%s211 + $0x388] sm:$0xff]
        %v376 = vld [vmem:[%s211 + $0x390] sm:$0xff]
        %v377 = vld [vmem:[%s211 + $0x398] sm:$0xff]
        %v378 = vld [vmem:[%s211 + $0x3a0] sm:$0xff]
        %v379 = vld [vmem:[%s211 + $0x3a8] sm:$0xff]
        %v380 = vld [vmem:[%s211 + $0x3b0] sm:$0xff]
        %v381 = vld [vmem:[%s211 + $0x3b8] sm:$0xff]
        %v382 = vld [vmem:[%s211 + $0x3c0] sm:$0xff]
        %v383 = vld [vmem:[%s211 + $0x3c8] sm:$0xff]
        %v384 = vld [vmem:[%s211 + $0x3d0] sm:$0xff]
        %v385 = vld [vmem:[%s211 + $0x3d8] sm:$0xff]
        %v386 = vld [vmem:[%s211 + $0x3e0] sm:$0xff]
        %v387 = vld [vmem:[%s211 + $0x3e8] sm:$0xff]
        %v388 = vld [vmem:[%s211 + $0x3f0] sm:$0xff]
        %v389 = vld [vmem:[%s211 + $0x3f8] sm:$0xff]
        %v394 = vunpack.c.l.b16 %v258
        %v395 = vunpack.c.h.b16 %v258
        %v396 = vunpack.c.l.b16 %v259
        %v397 = vunpack.c.h.b16 %v259
        %v398 = vunpack.c.l.b16 %v260
        %v399 = vunpack.c.h.b16 %v260
        %v400 = vunpack.c.l.b16 %v261
        %v401 = vunpack.c.h.b16 %v261
        %v402 = vpack.c.b16 %v398, %v394
        %v403 = vpack.c.b16 %v399, %v395
        %v404 = vpack.c.b16 %v400, %v396
        %v405 = vpack.c.b16 %v401, %v397
        %v538 = vunpack.c.l.b16 %v262
        %v539 = vunpack.c.h.b16 %v262
        %v540 = vunpack.c.l.b16 %v263
        %v541 = vunpack.c.h.b16 %v263
        %v542 = vunpack.c.l.b16 %v264
        %v543 = vunpack.c.h.b16 %v264
        %v544 = vunpack.c.l.b16 %v265
        %v545 = vunpack.c.h.b16 %v265
        %v546 = vunpack.c.l.b16 %v266
        %v547 = vunpack.c.h.b16 %v266
        %v548 = vunpack.c.l.b16 %v267
        %v549 = vunpack.c.h.b16 %v267
        %v550 = vunpack.c.l.b16 %v268
        %v551 = vunpack.c.h.b16 %v268
        %v552 = vunpack.c.l.b16 %v269
        %v553 = vunpack.c.h.b16 %v269
        %v554 = vunpack.c.l.b16 %v270
        %v555 = vunpack.c.h.b16 %v270
        %v556 = vunpack.c.l.b16 %v271
        %v557 = vunpack.c.h.b16 %v271
        %v558 = vunpack.c.l.b16 %v272
        %v559 = vunpack.c.h.b16 %v272
        %v560 = vunpack.c.l.b16 %v273
        %v561 = vunpack.c.h.b16 %v273
        %v562 = vunpack.c.l.b16 %v274
        %v563 = vunpack.c.h.b16 %v274
        %v564 = vunpack.c.l.b16 %v275
        %v565 = vunpack.c.h.b16 %v275
        %v566 = vunpack.c.l.b16 %v276
        %v567 = vunpack.c.h.b16 %v276
        %v568 = vunpack.c.l.b16 %v277
        %v569 = vunpack.c.h.b16 %v277
        %v570 = vunpack.c.l.b16 %v278
        %v571 = vunpack.c.h.b16 %v278
        %v572 = vunpack.c.l.b16 %v279
        %v573 = vunpack.c.h.b16 %v279
        %v574 = vunpack.c.l.b16 %v280
        %v575 = vunpack.c.h.b16 %v280
        %v576 = vunpack.c.l.b16 %v281
        %v577 = vunpack.c.h.b16 %v281
        %v578 = vunpack.c.l.b16 %v282
        %v579 = vunpack.c.h.b16 %v282
        %v580 = vunpack.c.l.b16 %v283
        %v581 = vunpack.c.h.b16 %v283
        %v582 = vunpack.c.l.b16 %v284
        %v583 = vunpack.c.h.b16 %v284
        %v584 = vunpack.c.l.b16 %v285
        %v585 = vunpack.c.h.b16 %v285
        %v586 = vunpack.c.l.b16 %v286
        %v587 = vunpack.c.h.b16 %v286
        %v588 = vunpack.c.l.b16 %v287
        %v589 = vunpack.c.h.b16 %v287
        %v590 = vunpack.c.l.b16 %v288
        %v591 = vunpack.c.h.b16 %v288
        %v592 = vunpack.c.l.b16 %v289
        %v593 = vunpack.c.h.b16 %v289
        %v594 = vunpack.c.l.b16 %v290
        %v595 = vunpack.c.h.b16 %v290
        %v596 = vunpack.c.l.b16 %v291
        %v597 = vunpack.c.h.b16 %v291
        %v598 = vunpack.c.l.b16 %v292
        %v599 = vunpack.c.h.b16 %v292
        %v600 = vunpack.c.l.b16 %v293
        %v601 = vunpack.c.h.b16 %v293
        %v602 = vunpack.c.l.b16 %v294
        %v603 = vunpack.c.h.b16 %v294
        %v604 = vunpack.c.l.b16 %v295
        %v605 = vunpack.c.h.b16 %v295
        %v606 = vunpack.c.l.b16 %v296
        %v607 = vunpack.c.h.b16 %v296
        %v608 = vunpack.c.l.b16 %v297
        %v609 = vunpack.c.h.b16 %v297
        %v610 = vunpack.c.l.b16 %v298
        %v611 = vunpack.c.h.b16 %v298
        %v612 = vunpack.c.l.b16 %v299
        %v613 = vunpack.c.h.b16 %v299
        %v614 = vunpack.c.l.b16 %v300
        %v615 = vunpack.c.h.b16 %v300
        %v616 = vunpack.c.l.b16 %v301
        %v617 = vunpack.c.h.b16 %v301
        %v618 = vunpack.c.l.b16 %v302
        %v619 = vunpack.c.h.b16 %v302
        %v620 = vunpack.c.l.b16 %v303
        %v621 = vunpack.c.h.b16 %v303
        %v622 = vunpack.c.l.b16 %v304
        %v623 = vunpack.c.h.b16 %v304
        %v624 = vunpack.c.l.b16 %v305
        %v625 = vunpack.c.h.b16 %v305
        %v626 = vunpack.c.l.b16 %v306
        %v627 = vunpack.c.h.b16 %v306
        %v628 = vunpack.c.l.b16 %v307
        %v629 = vunpack.c.h.b16 %v307
        %v630 = vunpack.c.l.b16 %v308
        %v631 = vunpack.c.h.b16 %v308
        %v632 = vunpack.c.l.b16 %v309
        %v633 = vunpack.c.h.b16 %v309
        %v634 = vunpack.c.l.b16 %v310
        %v635 = vunpack.c.h.b16 %v310
        %v636 = vunpack.c.l.b16 %v311
        %v637 = vunpack.c.h.b16 %v311
        %v638 = vunpack.c.l.b16 %v312
        %v639 = vunpack.c.h.b16 %v312
        %v640 = vunpack.c.l.b16 %v313
        %v641 = vunpack.c.h.b16 %v313
        %v642 = vunpack.c.l.b16 %v314
        %v643 = vunpack.c.h.b16 %v314
        %v644 = vunpack.c.l.b16 %v315
        %v645 = vunpack.c.h.b16 %v315
        %v646 = vunpack.c.l.b16 %v316
        %v647 = vunpack.c.h.b16 %v316
        %v648 = vunpack.c.l.b16 %v317
        %v649 = vunpack.c.h.b16 %v317
        %v650 = vunpack.c.l.b16 %v318
        %v651 = vunpack.c.h.b16 %v318
        %v652 = vunpack.c.l.b16 %v319
        %v653 = vunpack.c.h.b16 %v319
        %v654 = vunpack.c.l.b16 %v320
        %v655 = vunpack.c.h.b16 %v320
        %v656 = vunpack.c.l.b16 %v321
        %v657 = vunpack.c.h.b16 %v321
        %v658 = vunpack.c.l.b16 %v322
        %v659 = vunpack.c.h.b16 %v322
        %v660 = vunpack.c.l.b16 %v323
        %v661 = vunpack.c.h.b16 %v323
        %v662 = vunpack.c.l.b16 %v324
        %v663 = vunpack.c.h.b16 %v324
        %v664 = vunpack.c.l.b16 %v325
        %v665 = vunpack.c.h.b16 %v325
        %v666 = vunpack.c.l.b16 %v326
        %v667 = vunpack.c.h.b16 %v326
        %v668 = vunpack.c.l.b16 %v327
        %v669 = vunpack.c.h.b16 %v327
        %v670 = vunpack.c.l.b16 %v328
        %v671 = vunpack.c.h.b16 %v328
        %v672 = vunpack.c.l.b16 %v329
        %v673 = vunpack.c.h.b16 %v329
        %v674 = vunpack.c.l.b16 %v330
        %v675 = vunpack.c.h.b16 %v330
        %v676 = vunpack.c.l.b16 %v331
        %v677 = vunpack.c.h.b16 %v331
        %v678 = vunpack.c.l.b16 %v332
        %v679 = vunpack.c.h.b16 %v332
        %v680 = vunpack.c.l.b16 %v333
        %v681 = vunpack.c.h.b16 %v333
        %v682 = vunpack.c.l.b16 %v334
        %v683 = vunpack.c.h.b16 %v334
        %v684 = vunpack.c.l.b16 %v335
        %v685 = vunpack.c.h.b16 %v335
        %v686 = vunpack.c.l.b16 %v336
        %v687 = vunpack.c.h.b16 %v336
        %v688 = vunpack.c.l.b16 %v337
        %v689 = vunpack.c.h.b16 %v337
        %v690 = vunpack.c.l.b16 %v338
        %v691 = vunpack.c.h.b16 %v338
        %v692 = vunpack.c.l.b16 %v339
        %v693 = vunpack.c.h.b16 %v339
        %v694 = vunpack.c.l.b16 %v340
        %v695 = vunpack.c.h.b16 %v340
        %v696 = vunpack.c.l.b16 %v341
        %v697 = vunpack.c.h.b16 %v341
        %v698 = vunpack.c.l.b16 %v342
        %v699 = vunpack.c.h.b16 %v342
        %v700 = vunpack.c.l.b16 %v343
        %v701 = vunpack.c.h.b16 %v343
        %v702 = vunpack.c.l.b16 %v344
        %v703 = vunpack.c.h.b16 %v344
        %v704 = vunpack.c.l.b16 %v345
        %v705 = vunpack.c.h.b16 %v345
        %v706 = vunpack.c.l.b16 %v346
        %v707 = vunpack.c.h.b16 %v346
        %v708 = vunpack.c.l.b16 %v347
        %v709 = vunpack.c.h.b16 %v347
        %v710 = vunpack.c.l.b16 %v348
        %v711 = vunpack.c.h.b16 %v348
        %v712 = vunpack.c.l.b16 %v349
        %v713 = vunpack.c.h.b16 %v349
        %v714 = vunpack.c.l.b16 %v350
        %v715 = vunpack.c.h.b16 %v350
        %v716 = vunpack.c.l.b16 %v351
        %v717 = vunpack.c.h.b16 %v351
        %v718 = vunpack.c.l.b16 %v352
        %v719 = vunpack.c.h.b16 %v352
        %v720 = vunpack.c.l.b16 %v353
        %v721 = vunpack.c.h.b16 %v353
        %v722 = vunpack.c.l.b16 %v354
        %v723 = vunpack.c.h.b16 %v354
        %v724 = vunpack.c.l.b16 %v355
        %v725 = vunpack.c.h.b16 %v355
        %v726 = vunpack.c.l.b16 %v356
        %v727 = vunpack.c.h.b16 %v356
        %v728 = vunpack.c.l.b16 %v357
        %v729 = vunpack.c.h.b16 %v357
        %v730 = vunpack.c.l.b16 %v358
        %v731 = vunpack.c.h.b16 %v358
        %v732 = vunpack.c.l.b16 %v359
        %v733 = vunpack.c.h.b16 %v359
        %v734 = vunpack.c.l.b16 %v360
        %v735 = vunpack.c.h.b16 %v360
        %v736 = vunpack.c.l.b16 %v361
        %v737 = vunpack.c.h.b16 %v361
        %v738 = vunpack.c.l.b16 %v362
        %v739 = vunpack.c.h.b16 %v362
        %v740 = vunpack.c.l.b16 %v363
        %v741 = vunpack.c.h.b16 %v363
        %v742 = vunpack.c.l.b16 %v364
        %v743 = vunpack.c.h.b16 %v364
        %v744 = vunpack.c.l.b16 %v365
        %v745 = vunpack.c.h.b16 %v365
        %v746 = vunpack.c.l.b16 %v366
        %v747 = vunpack.c.h.b16 %v366
        %v748 = vunpack.c.l.b16 %v367
        %v749 = vunpack.c.h.b16 %v367
        %v750 = vunpack.c.l.b16 %v368
        %v751 = vunpack.c.h.b16 %v368
        %v752 = vunpack.c.l.b16 %v369
        %v753 = vunpack.c.h.b16 %v369
        %v754 = vunpack.c.l.b16 %v370
        %v755 = vunpack.c.h.b16 %v370
        %v756 = vunpack.c.l.b16 %v371
        %v757 = vunpack.c.h.b16 %v371
        %v758 = vunpack.c.l.b16 %v372
        %v759 = vunpack.c.h.b16 %v372
        %v760 = vunpack.c.l.b16 %v373
        %v761 = vunpack.c.h.b16 %v373
        %v762 = vunpack.c.l.b16 %v374
        %v763 = vunpack.c.h.b16 %v374
        %v764 = vunpack.c.l.b16 %v375
        %v765 = vunpack.c.h.b16 %v375
        %v766 = vunpack.c.l.b16 %v376
        %v767 = vunpack.c.h.b16 %v376
        %v768 = vunpack.c.l.b16 %v377
        %v769 = vunpack.c.h.b16 %v377
        %v770 = vunpack.c.l.b16 %v378
        %v771 = vunpack.c.h.b16 %v378
        %v772 = vunpack.c.l.b16 %v379
        %v773 = vunpack.c.h.b16 %v379
        %v774 = vunpack.c.l.b16 %v380
        %v775 = vunpack.c.h.b16 %v380
        %v776 = vunpack.c.l.b16 %v381
        %v777 = vunpack.c.h.b16 %v381
        %v778 = vunpack.c.l.b16 %v382
        %v779 = vunpack.c.h.b16 %v382
        %v780 = vunpack.c.l.b16 %v383
        %v781 = vunpack.c.h.b16 %v383
        %v782 = vunpack.c.l.b16 %v384
        %v783 = vunpack.c.h.b16 %v384
        %v784 = vunpack.c.l.b16 %v385
        %v785 = vunpack.c.h.b16 %v385
        %v786 = vunpack.c.l.b16 %v386
        %v787 = vunpack.c.h.b16 %v386
        %v788 = vunpack.c.l.b16 %v387
        %v789 = vunpack.c.h.b16 %v387
        %v790 = vunpack.c.l.b16 %v388
        %v791 = vunpack.c.h.b16 %v388
        %v792 = vunpack.c.l.b16 %v389
        %v793 = vunpack.c.h.b16 %v389
        %v794 = vpack.c.b16 %v542, %v538
        %v795 = vpack.c.b16 %v543, %v539
        %v796 = vpack.c.b16 %v544, %v540
        %v797 = vpack.c.b16 %v545, %v541
        %v798 = vpack.c.b16 %v550, %v546
        %v799 = vpack.c.b16 %v551, %v547
        %v800 = vpack.c.b16 %v552, %v548
        %v801 = vpack.c.b16 %v553, %v549
        %v802 = vpack.c.b16 %v558, %v554
        %v803 = vpack.c.b16 %v559, %v555
        %v804 = vpack.c.b16 %v560, %v556
        %v805 = vpack.c.b16 %v561, %v557
        %v806 = vpack.c.b16 %v566, %v562
        %v807 = vpack.c.b16 %v567, %v563
        %v808 = vpack.c.b16 %v568, %v564
        %v809 = vpack.c.b16 %v569, %v565
        %v810 = vpack.c.b16 %v574, %v570
        %v811 = vpack.c.b16 %v575, %v571
        %v812 = vpack.c.b16 %v576, %v572
        %v813 = vpack.c.b16 %v577, %v573
        %v814 = vpack.c.b16 %v582, %v578
        %v815 = vpack.c.b16 %v583, %v579
        %v816 = vpack.c.b16 %v584, %v580
        %v817 = vpack.c.b16 %v585, %v581
        %v818 = vpack.c.b16 %v590, %v586
        %v819 = vpack.c.b16 %v591, %v587
        %v820 = vpack.c.b16 %v592, %v588
        %v821 = vpack.c.b16 %v593, %v589
        %v822 = vpack.c.b16 %v598, %v594
        %v823 = vpack.c.b16 %v599, %v595
        %v824 = vpack.c.b16 %v600, %v596
        %v825 = vpack.c.b16 %v601, %v597
        %v826 = vpack.c.b16 %v606, %v602
        %v827 = vpack.c.b16 %v607, %v603
        %v828 = vpack.c.b16 %v608, %v604
        %v829 = vpack.c.b16 %v609, %v605
        %v830 = vpack.c.b16 %v614, %v610
        %v831 = vpack.c.b16 %v615, %v611
        %v832 = vpack.c.b16 %v616, %v612
        %v833 = vpack.c.b16 %v617, %v613
        %v834 = vpack.c.b16 %v622, %v618
        %v835 = vpack.c.b16 %v623, %v619
        %v836 = vpack.c.b16 %v624, %v620
        %v837 = vpack.c.b16 %v625, %v621
        %v838 = vpack.c.b16 %v630, %v626
        %v839 = vpack.c.b16 %v631, %v627
        %v840 = vpack.c.b16 %v632, %v628
        %v841 = vpack.c.b16 %v633, %v629
        %v842 = vpack.c.b16 %v638, %v634
        %v843 = vpack.c.b16 %v639, %v635
        %v844 = vpack.c.b16 %v640, %v636
        %v845 = vpack.c.b16 %v641, %v637
        %v846 = vpack.c.b16 %v646, %v642
        %v847 = vpack.c.b16 %v647, %v643
        %v848 = vpack.c.b16 %v648, %v644
        %v849 = vpack.c.b16 %v649, %v645
        %v850 = vpack.c.b16 %v654, %v650
        %v851 = vpack.c.b16 %v655, %v651
        %v852 = vpack.c.b16 %v656, %v652
        %v853 = vpack.c.b16 %v657, %v653
        %v854 = vpack.c.b16 %v662, %v658
        %v855 = vpack.c.b16 %v663, %v659
        %v856 = vpack.c.b16 %v664, %v660
        %v857 = vpack.c.b16 %v665, %v661
        %v858 = vpack.c.b16 %v670, %v666
        %v859 = vpack.c.b16 %v671, %v667
        %v860 = vpack.c.b16 %v672, %v668
        %v861 = vpack.c.b16 %v673, %v669
        %v862 = vpack.c.b16 %v678, %v674
        %v863 = vpack.c.b16 %v679, %v675
        %v864 = vpack.c.b16 %v680, %v676
        %v865 = vpack.c.b16 %v681, %v677
        %v866 = vpack.c.b16 %v686, %v682
        %v867 = vpack.c.b16 %v687, %v683
        %v868 = vpack.c.b16 %v688, %v684
        %v869 = vpack.c.b16 %v689, %v685
        %v870 = vpack.c.b16 %v694, %v690
        %v871 = vpack.c.b16 %v695, %v691
        %v872 = vpack.c.b16 %v696, %v692
        %v873 = vpack.c.b16 %v697, %v693
        %v874 = vpack.c.b16 %v702, %v698
        %v875 = vpack.c.b16 %v703, %v699
        %v876 = vpack.c.b16 %v704, %v700
        %v877 = vpack.c.b16 %v705, %v701
        %v878 = vpack.c.b16 %v710, %v706
        %v879 = vpack.c.b16 %v711, %v707
        %v880 = vpack.c.b16 %v712, %v708
        %v881 = vpack.c.b16 %v713, %v709
        %v882 = vpack.c.b16 %v718, %v714
        %v883 = vpack.c.b16 %v719, %v715
        %v884 = vpack.c.b16 %v720, %v716
        %v885 = vpack.c.b16 %v721, %v717
        %v886 = vpack.c.b16 %v726, %v722
        %v887 = vpack.c.b16 %v727, %v723
        %v888 = vpack.c.b16 %v728, %v724
        %v889 = vpack.c.b16 %v729, %v725
        %v890 = vpack.c.b16 %v734, %v730
        %v891 = vpack.c.b16 %v735, %v731
        %v892 = vpack.c.b16 %v736, %v732
        %v893 = vpack.c.b16 %v737, %v733
        %v894 = vpack.c.b16 %v742, %v738
        %v895 = vpack.c.b16 %v743, %v739
        %v896 = vpack.c.b16 %v744, %v740
        %v897 = vpack.c.b16 %v745, %v741
        %v898 = vpack.c.b16 %v750, %v746
        %v899 = vpack.c.b16 %v751, %v747
        %v900 = vpack.c.b16 %v752, %v748
        %v901 = vpack.c.b16 %v753, %v749
        %v902 = vpack.c.b16 %v758, %v754
        %v903 = vpack.c.b16 %v759, %v755
        %v904 = vpack.c.b16 %v760, %v756
        %v905 = vpack.c.b16 %v761, %v757
        %v906 = vpack.c.b16 %v766, %v762
        %v907 = vpack.c.b16 %v767, %v763
        %v908 = vpack.c.b16 %v768, %v764
        %v909 = vpack.c.b16 %v769, %v765
        %v910 = vpack.c.b16 %v774, %v770
        %v911 = vpack.c.b16 %v775, %v771
        %v912 = vpack.c.b16 %v776, %v772
        %v913 = vpack.c.b16 %v777, %v773
        %v914 = vpack.c.b16 %v782, %v778
        %v915 = vpack.c.b16 %v783, %v779
        %v916 = vpack.c.b16 %v784, %v780
        %v917 = vpack.c.b16 %v785, %v781
        %v918 = vpack.c.b16 %v790, %v786
        %v919 = vpack.c.b16 %v791, %v787
        %v920 = vpack.c.b16 %v792, %v788
        %v921 = vpack.c.b16 %v793, %v789
        %1050 = vmatprep.subr.bf16.mxu0 %v823
        %1051 = vmatpush1.bf16.msra.mxu0 %v822
        %1052 = vmatprep.subr.bf16.mxu0 %v819
        %1053 = vmatpush1.bf16.msra.mxu0 %v818
        %1054 = vmatprep.subr.bf16.mxu0 %v815
        %1055 = vmatpush1.bf16.msra.mxu0 %v814
        %1056 = vmatprep.subr.bf16.mxu0 %v811
        %1057 = vmatpush1.bf16.msra.mxu0 %v810
        %1058 = vmatprep.subr.bf16.mxu0 %v807
        %1059 = vmatpush1.bf16.msra.mxu0 %v806
        %1060 = vmatprep.subr.bf16.mxu0 %v803
        %1061 = vmatpush1.bf16.msra.mxu0 %v802
        %1062 = vmatprep.subr.bf16.mxu0 %v799
        %1063 = vmatpush1.bf16.msra.mxu0 %v798
        %1064 = vmatprep.subr.bf16.mxu0 %v795
        %1065 = vmatpush1.bf16.msra.mxu0 %v794
        %1066 = vmatprep.subr.bf16.mxu0 %v855
        %1067 = vmatpush2.bf16.msra.mxu0 %v854
        %1068 = vmatprep.subr.bf16.mxu0 %v851
        %1069 = vmatpush2.bf16.msra.mxu0 %v850
        %1070 = vmatprep.subr.bf16.mxu0 %v847
        %1071 = vmatpush2.bf16.msra.mxu0 %v846
        %1072 = vmatprep.subr.bf16.mxu0 %v843
        %1073 = vmatpush2.bf16.msra.mxu0 %v842
        %1074 = vmatprep.subr.bf16.mxu0 %v839
        %1075 = vmatpush2.bf16.msra.mxu0 %v838
        %1076 = vmatprep.subr.bf16.mxu0 %v835
        %1077 = vmatpush2.bf16.msra.mxu0 %v834
        %1078 = vmatprep.subr.bf16.mxu0 %v831
        %1079 = vmatpush2.bf16.msra.mxu0 %v830
        %1080 = vmatprep.subr.bf16.mxu0 %v827
        %1081 = vmatpush2.bf16.msra.mxu0 %v826
        %1082 = vmatprep.mubr.bf16.mxu0 %v403
        %1083 = vmatmul.mubr.bf16.gmra.mxu0 %v402
        %v1084 = vpop.f32.mrf.mxu0
        %v1085 = vadd.f32 0.0, %v1084
        %v1086 = vpop.f32.mrf.mxu0
        %v1087 = vadd.f32 0.0, %v1086
        %v1088 = vpop.f32.mrf.mxu0
        %v1089 = vadd.f32 0.0, %v1088
        %v1090 = vpop.f32.mrf.mxu0
        %v1091 = vadd.f32 0.0, %v1090
        %1092 = vdwg.mxu0
        %1093 = vmatprep.subr.bf16.mxu0 %v887
        %1094 = vmatpush1.bf16.msra.mxu0 %v886
        %1095 = vmatprep.subr.bf16.mxu0 %v883
        %1096 = vmatpush1.bf16.msra.mxu0 %v882
        %1097 = vmatprep.subr.bf16.mxu0 %v879
        %1098 = vmatpush1.bf16.msra.mxu0 %v878
        %1099 = vmatprep.subr.bf16.mxu0 %v875
        %1100 = vmatpush1.bf16.msra.mxu0 %v874
        %1101 = vmatprep.subr.bf16.mxu0 %v871
        %1102 = vmatpush1.bf16.msra.mxu0 %v870
        %1103 = vmatprep.subr.bf16.mxu0 %v867
        %1104 = vmatpush1.bf16.msra.mxu0 %v866
        %1105 = vmatprep.subr.bf16.mxu0 %v863
        %1106 = vmatpush1.bf16.msra.mxu0 %v862
        %1107 = vmatprep.subr.bf16.mxu0 %v859
        %1108 = vmatpush1.bf16.msra.mxu0 %v858
        %1109 = vmatprep.subr.bf16.mxu0 %v919
        %1110 = vmatpush2.bf16.msra.mxu0 %v918
        %1111 = vmatprep.subr.bf16.mxu0 %v915
        %1112 = vmatpush2.bf16.msra.mxu0 %v914
        %1113 = vmatprep.subr.bf16.mxu0 %v911
        %1114 = vmatpush2.bf16.msra.mxu0 %v910
        %1115 = vmatprep.subr.bf16.mxu0 %v907
        %1116 = vmatpush2.bf16.msra.mxu0 %v906
        %1117 = vmatprep.subr.bf16.mxu0 %v903
        %1118 = vmatpush2.bf16.msra.mxu0 %v902
        %1119 = vmatprep.subr.bf16.mxu0 %v899
        %1120 = vmatpush2.bf16.msra.mxu0 %v898
        %1121 = vmatprep.subr.bf16.mxu0 %v895
        %1122 = vmatpush2.bf16.msra.mxu0 %v894
        %1123 = vmatprep.subr.bf16.mxu0 %v891
        %1124 = vmatpush2.bf16.msra.mxu0 %v890
        %1125 = vmatprep.mubr.bf16.mxu0 %v405
        %1126 = vmatmul.mubr.bf16.gmra.mxu0 %v404
        %v1127 = vpop.f32.mrf.mxu0
        %v1128 = vadd.f32 %v1085, %v1127
        %v1129 = vpop.f32.mrf.mxu0
        %v1130 = vadd.f32 %v1087, %v1129
        %v1131 = vpop.f32.mrf.mxu0
        %v1132 = vadd.f32 %v1089, %v1131
        %v1133 = vpop.f32.mrf.mxu0
        %v1134 = vadd.f32 %v1091, %v1133
        %1135 = vdwg.mxu0
        %1136 = vmatprep.subr.bf16.mxu0 %v825
        %1137 = vmatpush1.bf16.msra.mxu0 %v824
        %1138 = vmatprep.subr.bf16.mxu0 %v821
        %1139 = vmatpush1.bf16.msra.mxu0 %v820
        %1140 = vmatprep.subr.bf16.mxu0 %v817
        %1141 = vmatpush1.bf16.msra.mxu0 %v816
        %1142 = vmatprep.subr.bf16.mxu0 %v813
        %1143 = vmatpush1.bf16.msra.mxu0 %v812
        %1144 = vmatprep.subr.bf16.mxu0 %v809
        %1145 = vmatpush1.bf16.msra.mxu0 %v808
        %1146 = vmatprep.subr.bf16.mxu0 %v805
        %1147 = vmatpush1.bf16.msra.mxu0 %v804
        %1148 = vmatprep.subr.bf16.mxu0 %v801
        %1149 = vmatpush1.bf16.msra.mxu0 %v800
        %1150 = vmatprep.subr.bf16.mxu0 %v797
        %1151 = vmatpush1.bf16.msra.mxu0 %v796
        %1152 = vmatprep.subr.bf16.mxu0 %v857
        %1153 = vmatpush2.bf16.msra.mxu0 %v856
        %1154 = vmatprep.subr.bf16.mxu0 %v853
        %1155 = vmatpush2.bf16.msra.mxu0 %v852
        %1156 = vmatprep.subr.bf16.mxu0 %v849
        %1157 = vmatpush2.bf16.msra.mxu0 %v848
        %1158 = vmatprep.subr.bf16.mxu0 %v845
        %1159 = vmatpush2.bf16.msra.mxu0 %v844
        %1160 = vmatprep.subr.bf16.mxu0 %v841
        %1161 = vmatpush2.bf16.msra.mxu0 %v840
        %1162 = vmatprep.subr.bf16.mxu0 %v837
        %1163 = vmatpush2.bf16.msra.mxu0 %v836
        %1164 = vmatprep.subr.bf16.mxu0 %v833
        %1165 = vmatpush2.bf16.msra.mxu0 %v832
        %1166 = vmatprep.subr.bf16.mxu0 %v829
        %1167 = vmatpush2.bf16.msra.mxu0 %v828
        %1168 = vmatprep.mubr.bf16.mxu0 %v403
        %1169 = vmatmul.mubr.bf16.gmra.mxu0 %v402
        %v1170 = vpop.f32.mrf.mxu0
        %v1171 = vadd.f32 0.0, %v1170
        %v1172 = vpop.f32.mrf.mxu0
        %v1173 = vadd.f32 0.0, %v1172
        %v1174 = vpop.f32.mrf.mxu0
        %v1175 = vadd.f32 0.0, %v1174
        %v1176 = vpop.f32.mrf.mxu0
        %v1177 = vadd.f32 0.0, %v1176
        %1178 = vdwg.mxu0
        %1179 = vmatprep.subr.bf16.mxu0 %v889
        %1180 = vmatpush1.bf16.msra.mxu0 %v888
        %1181 = vmatprep.subr.bf16.mxu0 %v885
        %1182 = vmatpush1.bf16.msra.mxu0 %v884
        %1183 = vmatprep.subr.bf16.mxu0 %v881
        %1184 = vmatpush1.bf16.msra.mxu0 %v880
        %1185 = vmatprep.subr.bf16.mxu0 %v877
        %1186 = vmatpush1.bf16.msra.mxu0 %v876
        %1187 = vmatprep.subr.bf16.mxu0 %v873
        %1188 = vmatpush1.bf16.msra.mxu0 %v872
        %1189 = vmatprep.subr.bf16.mxu0 %v869
        %1190 = vmatpush1.bf16.msra.mxu0 %v868
        %1191 = vmatprep.subr.bf16.mxu0 %v865
        %1192 = vmatpush1.bf16.msra.mxu0 %v864
        %1193 = vmatprep.subr.bf16.mxu0 %v861
        %1194 = vmatpush1.bf16.msra.mxu0 %v860
        %1195 = vmatprep.subr.bf16.mxu0 %v921
        %1196 = vmatpush2.bf16.msra.mxu0 %v920
        %1197 = vmatprep.subr.bf16.mxu0 %v917
        %1198 = vmatpush2.bf16.msra.mxu0 %v916
        %1199 = vmatprep.subr.bf16.mxu0 %v913
        %1200 = vmatpush2.bf16.msra.mxu0 %v912
        %1201 = vmatprep.subr.bf16.mxu0 %v909
        %1202 = vmatpush2.bf16.msra.mxu0 %v908
        %1203 = vmatprep.subr.bf16.mxu0 %v905
        %1204 = vmatpush2.bf16.msra.mxu0 %v904
        %1205 = vmatprep.subr.bf16.mxu0 %v901
        %1206 = vmatpush2.bf16.msra.mxu0 %v900
        %1207 = vmatprep.subr.bf16.mxu0 %v897
        %1208 = vmatpush2.bf16.msra.mxu0 %v896
        %1209 = vmatprep.subr.bf16.mxu0 %v893
        %1210 = vmatpush2.bf16.msra.mxu0 %v892
        %1211 = vmatprep.mubr.bf16.mxu0 %v405
        %1212 = vmatmul.mubr.bf16.gmra.mxu0 %v404
        %v1213 = vpop.f32.mrf.mxu0
        %v1214 = vadd.f32 %v1171, %v1213
        %v1215 = vpop.f32.mrf.mxu0
        %v1216 = vadd.f32 %v1173, %v1215
        %v1217 = vpop.f32.mrf.mxu0
        %v1218 = vadd.f32 %v1175, %v1217
        %v1219 = vpop.f32.mrf.mxu0
        %v1220 = vadd.f32 %v1177, %v1219
        %1221 = vdwg.mxu0
        %v1222 = vpack.c.bf16 %v1132, %v1128
        %v1223 = vpack.c.bf16 %v1134, %v1130
        %v1224 = vpack.c.bf16 %v1218, %v1214
        %v1225 = vpack.c.bf16 %v1220, %v1216
        %v1230 = vunpack.c.l.b16 %v1222
        %v1231 = vunpack.c.l.b16 %v1223
        %v1232 = vunpack.c.l.b16 %v1224
        %v1233 = vunpack.c.l.b16 %v1225
        %v1234 = vunpack.c.h.b16 %v1222
        %v1235 = vunpack.c.h.b16 %v1223
        %v1236 = vunpack.c.h.b16 %v1224
        %v1237 = vunpack.c.h.b16 %v1225
        %v1238 = vpack.c.b16 %v1231, %v1230
        %v1239 = vpack.c.b16 %v1233, %v1232
        %v1240 = vpack.c.b16 %v1235, %v1234
        %v1241 = vpack.c.b16 %v1237, %v1236
        %1246 = vst [vmem:[%s231] sm:$0xff] %v1238
        %1247 = vst [vmem:[%s231 + $0x8] sm:$0xff] %v1239
        %1248 = vst [vmem:[%s231 + $0x10] sm:$0x33] %v1240
        %1249 = vst [vmem:[%s231 + $0x18] sm:$0x33] %v1241
        %v1250 = vadd.f32 %v1128, %v1130
        %v1251 = vadd.f32 %v1250, %v1214
        %v1252 = vadd.f32 %v1251, %v1216
        %1253 = vadd.xlane.f32.xlu0 %v1252
        %v1254 = vpop.xlane.xlu0 %1253
        %vm1255 = vcmask 1043456
        %v1256 = vsel %vm1255, %v1132, 0.0
        %v1257 = vsel %vm1255, %v1134, 0.0
        %v1258 = vadd.f32 %v1256, %v1257
        %v1259 = vsel %vm1255, %v1218, 0.0
        %v1260 = vadd.f32 %v1258, %v1259
        %v1261 = vsel %vm1255, %v1220, 0.0
        %v1262 = vadd.f32 %v1260, %v1261
        %1263 = vadd.xlane.f32.xlu0 %v1262
        %v1264 = vpop.xlane.xlu0 %1263
        %v1265 = vmul.f32 %v1254, 0.001953125
        %v1266 = vmul.f32 %v1264, 0.001953125
        %v1267 = vsub.f32 %v1128, %v1265
        %v1268 = vsub.f32 %v1130, %v1265
        %v1269 = vsub.f32 %v1214, %v1265
        %v1270 = vsub.f32 %v1216, %v1265
        %v1271 = vsub.f32 %v1132, %v1266
        %v1272 = vsub.f32 %v1134, %v1266
        %v1273 = vsub.f32 %v1218, %v1266
        %v1274 = vsub.f32 %v1220, %v1266
        %vm1275 = vcmask 7168
        %1276 = vst.msk [vmem:[%s252] sm:$0xff] %vm1275, %v1254
        %vm1277 = vcmask 3072
        %1278 = vst.msk [vmem:[%s252 + $0x8] sm:$0xf] %vm1277, %v1264
        %v1279 = vmul.f32 %v1267, %v1267
        %v1280 = vmul.f32 %v1268, %v1268
        %v1281 = vmul.f32 %v1269, %v1269
        %v1282 = vmul.f32 %v1270, %v1270
        %v1283 = vmul.f32 %v1271, %v1271
        %v1284 = vmul.f32 %v1272, %v1272
        %v1285 = vmul.f32 %v1273, %v1273
        %v1286 = vmul.f32 %v1274, %v1274
        %v1287 = vadd.f32 %v1279, %v1280
        %v1288 = vadd.f32 %v1287, %v1281
        %v1289 = vadd.f32 %v1288, %v1282
        %1290 = vadd.xlane.f32.xlu0 %v1289
        %v1291 = vpop.xlane.xlu0 %1290
        %v1292 = vsel %vm1255, %v1283, 0.0
        %v1293 = vsel %vm1255, %v1284, 0.0
        %v1294 = vadd.f32 %v1292, %v1293
        %v1295 = vsel %vm1255, %v1285, 0.0
        %v1296 = vadd.f32 %v1294, %v1295
        %v1297 = vsel %vm1255, %v1286, 0.0
        %v1298 = vadd.f32 %v1296, %v1297
        %1299 = vadd.xlane.f32.xlu0 %v1298
        %v1300 = vpop.xlane.xlu0 %1299
        %1301 = vst.msk [vmem:[%s257] sm:$0xff] %vm1275, %v1291
        %1302 = vst.msk [vmem:[%s257 + $0x8] sm:$0xf] %vm1277, %v1300
        %s1303 = sand.u32 %s78, 1
        %s1304 = scalar_lea.sflag [#allocation4], %s1303
        %s1305 = sand.u32 %s78, 1
        %s1306 = smul.addr %s1305, 32
        %s1307 = scalar_lea.vmem [#allocation7], %s1306
        %p1308 = scmp.lt.s32.totalorder %s23, 1
        %s1309 = scalar_select %p1308, %s23, 1
        %s1310 = smul.addr %s1309, 2
        %s1311 = smul.addr %s1310, 8
        %s1312 = scalar_lea.vmem %s3, %s1311
        %p1313 = scmp.lt.s32.totalorder %s23, 1
        %s1314 = scalar_select %p1313, %s23, 1
        %s1315 = smul.addr %s1314, 2
        %s1316 = smul.addr %s1315, 8
        %s1317 = scalar_lea.vmem %s4, %s1316
        // Predicated region
        $region37: #{tpu_custom_call.1} parent=27 // pred_check
          %p1318 = pneg %p88
        $region38: #{tpu_custom_call.1} parent=27 // pred_check_branch
          %1320 = sbr.rel (%p1318) target = $region40
        $region39: #{tpu_custom_call.1} parent=27 // pred_region
          %s1321 = smul.u32 4, %s23
          %s1323 = ssub.s32 512, 512
          %1324 = vsyncadd %s1304, %s1323
          %s1325 = smul.addr %s1321, 64
          %s1326 = scalar_lea.hbm %s2, %s1325
          %s1327 = sshll.u32 %s1307, 4
          %s1328 = int_to_ptr.vmem [resolvable:$true] %s1327
          %1333 = dma.vmem_to_hbm [thread:$0]  %s1328, 512, %s1326, %s1304, 256, 512, 16
        $region40: #{tpu_custom_call.1} parent=27 // pred_fallthru
          _
        // Predicated region
        $region41: #{tpu_custom_call.1} parent=27 // pred_check
          %p1334 = pneg %p114
        $region42: #{tpu_custom_call.1} parent=27 // pred_check_branch
          %1336 = sbr.rel (%p1334) target = $region44
        $region43: #{tpu_custom_call.1} parent=27 // pred_region
          _
        $region44: #{tpu_custom_call.1} parent=27 // pred_fallthru
          _
        // Predicated region
        $region45: #{tpu_custom_call.1} parent=27 // pred_check
          %p1337 = pneg %p140
        $region46: #{tpu_custom_call.1} parent=27 // pred_check_branch
          %1339 = sbr.rel (%p1337) target = $region48
        $region47: #{tpu_custom_call.1} parent=27 // pred_region
          _
        $region48: #{tpu_custom_call.1} parent=27 // pred_fallthru
          _
      $region28: #{tpu_custom_call.1} parent=5 // pred_fallthru
        _
      %p1340 = scmp.le.s32.totalorder 2, %s18
      // Predicated region
      $region49: #{tpu_custom_call.1} parent=5 // pred_check
        %p1341 = pneg %p1340
      $region50: #{tpu_custom_call.1} parent=5 // pred_check_branch
        %1343 = sbr.rel (%p1341) target = $region52
      $region51: #{tpu_custom_call.1} parent=5 // pred_region
        %s1344 = ssub.s32 %s18, 2
        // Predicated region
        $region53: #{tpu_custom_call.1} parent=51 // pred_check
          %p1345 = pneg %p94
        $region54: #{tpu_custom_call.1} parent=51 // pred_check_branch
          %1347 = sbr.rel (%p1345) target = $region56
        $region55: #{tpu_custom_call.1} parent=51 // pred_region
          %s1348 = sand.u32 %s79, 1
          %s1349 = scalar_lea.sflag [#allocation4], %s1348
          %s1350 = sand.u32 %s79, 1
          %s1351 = smul.addr %s1350, 32
          %s1352 = scalar_lea.vmem [#allocation7], %s1351
          %1353 = dma.done %s1349, 512
        $region56: #{tpu_custom_call.1} parent=51 // pred_fallthru
          _
        // Predicated region
        $region57: #{tpu_custom_call.1} parent=51 // pred_check
          %p1354 = pneg %p120
        $region58: #{tpu_custom_call.1} parent=51 // pred_check_branch
          %1356 = sbr.rel (%p1354) target = $region60
        $region59: #{tpu_custom_call.1} parent=51 // pred_region
          %p1357 = scmp.lt.s32.totalorder %s24, 1
          %s1358 = scalar_select %p1357, %s24, 1
          %s1359 = smul.addr %s1358, 2
          %s1360 = smul.addr %s1359, 8
          %s1361 = scalar_lea.vmem %s3, %s1360
        $region60: #{tpu_custom_call.1} parent=51 // pred_fallthru
          _
        // Predicated region
        $region61: #{tpu_custom_call.1} parent=51 // pred_check
          %p1362 = pneg %p146
        $region62: #{tpu_custom_call.1} parent=51 // pred_check_branch
          %1364 = sbr.rel (%p1362) target = $region64
        $region63: #{tpu_custom_call.1} parent=51 // pred_region
          %p1365 = scmp.lt.s32.totalorder %s24, 1
          %s1366 = scalar_select %p1365, %s24, 1
          %s1367 = smul.addr %s1366, 2
          %s1368 = smul.addr %s1367, 8
          %s1369 = scalar_lea.vmem %s4, %s1368
        $region64: #{tpu_custom_call.1} parent=51 // pred_fallthru
          _
      $region52: #{tpu_custom_call.1} parent=5 // pred_fallthru
        _
    $region6: #{tpu_custom_call.1} parent=1 // loop_footer
      %s22 = sadd.s32 1, %s18
    $region7: #{tpu_custom_call.1} parent=1 // loop_footer_branch
      %17 = sbr.rel target = $region3
    $region8: #{tpu_custom_call.1} parent=1 // loop_exit
      _
    %1370 = vsyncpa [#allocation3], 1
    %s1371 = scalar_lea.sflag [#allocation3], 1
    %1372 = vsyncpa %s1371, 1
    %1373 = vsyncpa [#allocation6], 1
    %s1374 = scalar_lea.sflag [#allocation6], 1
    %1375 = vsyncpa %s1374, 1
    %1376 = vsyncpa [#allocation4], 1
    %s1377 = scalar_lea.sflag [#allocation4], 1
    %1378 = vsyncpa %s1377, 1

</llo_original>
